<compile_context>
chip_gen: v6e
topology: v6e:2x2x1
jax: 0.10.0
libtpu: 0.0.40
codegen_flags: <defaults>
</compile_context>

<pallas_src>
import functools

import jax
import jax.numpy as jnp
from jax.experimental import pallas as pl
from jax.experimental.pallas import tpu as pltpu

EPS = 1e-5   # torch.nn.LayerNorm default eps
LANE = 128


def _leaky_relu(h):
    return jnp.where(h > 0, h, 0.01 * h)


def _masked_layernorm(h, gamma, beta, c_true):
    """LayerNorm over the last dim, counting only the first c_true lanes."""
    c_pad = h.shape[-1]
    if c_pad != c_true:
        lane = jax.lax.broadcasted_iota(jnp.int32, h.shape, 1)
        mask = (lane < c_true).astype(h.dtype)
        h = h * mask
    else:
        mask = None
    inv_c = 1.0 / c_true
    mean = jnp.sum(h, axis=-1, keepdims=True) * inv_c
    centered = h - mean
    if mask is not None:
        centered = centered * mask
    var = jnp.sum(centered * centered, axis=-1, keepdims=True) * inv_c
    return centered * jax.lax.rsqrt(var + EPS) * gamma + beta


def _gcn_layer_kernel(a_ref, xk_ref, res_ref, w_ref, b_ref, g_ref, be_ref,
                      o_ref, acc_ref, *, c_true, relu_before_norm,
                      relu_after_norm):
    """One GCN layer tile: grid = (node-row tiles i, node-col tiles k)."""
    k = pl.program_id(1)

    @pl.when(k == 0)
    def _():
        acc_ref[...] = jnp.zeros_like(acc_ref)

    # XW for this node-column block (bf16 operands, f32 accumulation).
    xw = jnp.dot(xk_ref[...], w_ref[...], preferred_element_type=jnp.float32)
    # Aggregate: A_hat[i, k] @ XW[k]  (bf16 operands, f32 accumulation).
    acc_ref[...] += jnp.dot(a_ref[...], xw.astype(jnp.bfloat16),
                            preferred_element_type=jnp.float32)

    @pl.when(k == pl.num_programs(1) - 1)
    def _():
        h = acc_ref[...] + b_ref[...].astype(jnp.float32)
        if relu_before_norm:
            h = _leaky_relu(h)
        h = h + res_ref[...].astype(jnp.float32)
        h = _masked_layernorm(h, g_ref[...].astype(jnp.float32),
                              be_ref[...].astype(jnp.float32), c_true)
        if relu_after_norm:
            h = _leaky_relu(h)
        o_ref[...] = h.astype(o_ref.dtype)


def _gcn_layer(a_bf16, x_in_bf16, residual_f32, w, b, g, be, *, c_true,
               relu_before_norm, relu_after_norm, out_dtype, tm, tk):
    n_pad, c_pad = x_in_bf16.shape
    grid = (n_pad // tm, n_pad // tk)
    kernel = functools.partial(
        _gcn_layer_kernel, c_true=c_true,
        relu_before_norm=relu_before_norm, relu_after_norm=relu_after_norm)
    const = lambda i, k: (0, 0)
    return pl.pallas_call(
        kernel,
        out_shape=jax.ShapeDtypeStruct((n_pad, c_pad), out_dtype),
        grid_spec=pltpu.PrefetchScalarGridSpec(
            num_scalar_prefetch=0,
            grid=grid,
            in_specs=[
                pl.BlockSpec((tm, tk), lambda i, k: (i, k)),      # A_hat tile
                pl.BlockSpec((tk, c_pad), lambda i, k: (k, 0)),   # X col block
                pl.BlockSpec((tm, c_pad), lambda i, k: (i, 0)),   # residual rows
                pl.BlockSpec((c_pad, c_pad), const),              # W (resident)
                pl.BlockSpec((1, c_pad), const),                  # bias
                pl.BlockSpec((1, c_pad), const),                  # gamma
                pl.BlockSpec((1, c_pad), const),                  # beta
            ],
            out_specs=pl.BlockSpec((tm, c_pad), lambda i, k: (i, 0)),
            scratch_shapes=[pltpu.VMEM((tm, c_pad), jnp.float32)],
        ),
        compiler_params=pltpu.CompilerParams(
            dimension_semantics=("parallel", "arbitrary"),
            vmem_limit_bytes=32 * 1024 * 1024,
        ),
    )(a_bf16, x_in_bf16, residual_f32, w, b, g, be)


def _round_up(x, m):
    return (x + m - 1) // m * m


def _pad2(x, rows, cols):
    r, c = x.shape
    return jnp.pad(x, ((0, rows - r), (0, cols - c)))


def gcn_forward(x, edge_index, params, *, tm_target=256, tk_target=512):
    n, c = x.shape
    w1, b1, g1, be1, w2, b2, g2, be2 = params

    # --- glue: dense normalized adjacency, PyG gcn_norm convention ---
    # edge (src -> dst): A[dst, src] = 1; add self-loops; deg = in-degree;
    # A_hat = D^{-1/2} A D^{-1/2}.
    # TODO(synk): replace the O(N^2) densified adjacency with a CSR /
    # scalar-prefetch sparse-gather kernel for large sparse graphs.
    src, dst = edge_index[0], edge_index[1]
    a = jnp.zeros((n, n), jnp.float32).at[dst, src].add(1.0)
    a = a + jnp.eye(n, dtype=jnp.float32)
    deg = jnp.sum(a, axis=1)
    dinv = jnp.where(deg > 0, jax.lax.rsqrt(deg), 0.0)
    a_norm = a * dinv[:, None] * dinv[None, :]

    # --- padding: lane-dense channels, tileable node dimension ---
    c_pad = _round_up(c, LANE)
    if n <= tk_target:
        n_pad = _round_up(n, 8)
        tm = tk = n_pad                       # single tile = full (padded) array
    else:
        n_pad = _round_up(n, tk_target)
        tm, tk = tm_target, tk_target

    a_p = _pad2(a_norm, n_pad, n_pad).astype(jnp.bfloat16)
    x_p = _pad2(x, n_pad, c_pad).astype(jnp.float32)
    x_bf = x_p.astype(jnp.bfloat16)

    def pw(w):                                # (C,C) -> (c_pad,c_pad) bf16
        return _pad2(w, c_pad, c_pad).astype(jnp.bfloat16)

    def pv(v):                                # (1,C) -> (1,c_pad) f32
        return _pad2(v.reshape(1, -1), 1, c_pad).astype(jnp.float32)

    # Layer 1: conv1 -> leaky_relu -> LayerNorm(x + residual)
    h1 = _gcn_layer(a_p, x_bf, x_p, pw(w1), pv(b1), pv(g1), pv(be1),
                    c_true=c, relu_before_norm=True, relu_after_norm=False,
                    out_dtype=jnp.bfloat16, tm=tm, tk=tk)
    # Layer 2: conv2 -> LayerNorm(x + residual) -> leaky_relu
    out = _gcn_layer(a_p, h1, x_p, pw(w2), pv(b2), pv(g2), pv(be2),
                     c_true=c, relu_before_norm=False, relu_after_norm=True,
                     out_dtype=jnp.float32, tm=tm, tk=tk)
    return out[:n, :c]


def gcn_reference(x, edge_index, params):
    """Pure-JAX f32 reference of the PyTorch module."""
    n = x.shape[0]
    src, dst = edge_index[0], edge_index[1]
    a = jnp.zeros((n, n), jnp.float32).at[dst, src].add(1.0)
    a = a + jnp.eye(n, dtype=jnp.float32)
    deg = jnp.sum(a, axis=1)
    dinv = jnp.where(deg > 0, jax.lax.rsqrt(deg), 0.0)
    a = a * dinv[:, None] * dinv[None, :]
    w1, b1, g1, be1, w2, b2, g2, be2 = params

    def ln(h, g, b):
        m = jnp.mean(h, -1, keepdims=True)
        v = jnp.mean((h - m) ** 2, -1, keepdims=True)
        return (h - m) * jax.lax.rsqrt(v + EPS) * g + b

    lrelu = lambda h: jnp.where(h > 0, h, 0.01 * h)
    res = x
    h = a @ (x @ w1) + b1
    h = ln(lrelu(h) + res, g1, be1)
    h2 = a @ (h @ w2) + b2
    return lrelu(ln(h2 + res, g2, be2))


if __name__ == "__main__":
    key = jax.random.PRNGKey(0)
    N, C = 16, 32  # small: 16 nodes, in=hidden=out=32 channels
    k0, k1, k2 = jax.random.split(key, 3)

    x = jax.random.normal(k0, (N, C), dtype=jnp.float32)

    # small undirected ring graph: edges i <-> (i+1) mod N
    s = jnp.arange(N, dtype=jnp.int32)
    d = (s + 1) % N
    edge_index = jnp.stack(
        [jnp.concatenate([s, d]), jnp.concatenate([d, s])], axis=0
    )  # [2, 2N]

    # deterministic parameter init (glorot-ish weights, LayerNorm at identity)
    scale = (2.0 / (C + C)) ** 0.5
    w1 = jax.random.normal(k1, (C, C), dtype=jnp.float32) * scale
    w2 = jax.random.normal(k2, (C, C), dtype=jnp.float32) * scale
    b1 = jnp.zeros((1, C), jnp.float32)
    b2 = jnp.zeros((1, C), jnp.float32)
    g1 = jnp.ones((1, C), jnp.float32)
    be1 = jnp.zeros((1, C), jnp.float32)
    g2 = jnp.ones((1, C), jnp.float32)
    be2 = jnp.zeros((1, C), jnp.float32)

    params = (w1, b1, g1, be1, w2, b2, g2, be2)

    out = gcn_forward(x, edge_index, params)
    out = jax.block_until_ready(out)

    assert out.shape == (N, C) and out.dtype == jnp.float32
    assert bool(jnp.all(jnp.isfinite(out)))

    # Loose check against the f32 reference (kernel uses bf16 operands).
    ref = gcn_reference(x, edge_index, params)
    max_err = float(jnp.max(jnp.abs(out - ref)))
    assert max_err < 0.1, f"max abs error vs reference too large: {max_err}"

    print("KERNEL_OK")
</pallas_src>

<mosaic_0001>
module attributes {stable_mosaic.version = 11 : i64} {
  func.func @_gcn_layer_kernel(%arg0: i32, %arg1: i32, %arg2: memref<16x16xbf16, #tpu.memory_space<vmem>>, %arg3: memref<16x128xbf16, #tpu.memory_space<vmem>>, %arg4: memref<16x128xf32, #tpu.memory_space<vmem>>, %arg5: memref<128x128xbf16, #tpu.memory_space<vmem>>, %arg6: memref<1x128xf32, #tpu.memory_space<vmem>>, %arg7: memref<1x128xf32, #tpu.memory_space<vmem>>, %arg8: memref<1x128xf32, #tpu.memory_space<vmem>>, %arg9: memref<16x128xbf16, #tpu.memory_space<vmem>>, %arg10: memref<16x128xf32, #tpu.memory_space<vmem>>) attributes {dimension_semantics = [#tpu.dimension_semantics<parallel>, #tpu.dimension_semantics<arbitrary>], iteration_bounds = array<i64: 1, 1>, scalar_prefetch = 0 : i64, scratch_operands = 1 : i64, tpu.core_type = #tpu.core_type<tc>, window_params = [{transform_indices = @transform_0, window_bounds = array<i64: 16, 16>}, {transform_indices = @transform_1, window_bounds = array<i64: 16, 128>}, {transform_indices = @transform_2, window_bounds = array<i64: 16, 128>}, {pipeline_mode = #tpu.pipeline_mode<synchronous>, transform_indices = @transform_3, window_bounds = array<i64: 128, 128>}, {pipeline_mode = #tpu.pipeline_mode<synchronous>, transform_indices = @transform_4, window_bounds = array<i64: 1, 128>}, {pipeline_mode = #tpu.pipeline_mode<synchronous>, transform_indices = @transform_5, window_bounds = array<i64: 1, 128>}, {pipeline_mode = #tpu.pipeline_mode<synchronous>, transform_indices = @transform_6, window_bounds = array<i64: 1, 128>}, {transform_indices = @transform_7, window_bounds = array<i64: 16, 128>}]} {
    %c0_i32 = arith.constant 0 : i32
    %0 = arith.cmpi eq, %arg1, %c0_i32 : i32
    %1 = arith.extui %0 : i1 to i32
    %c0_i32_0 = arith.constant 0 : i32
    %2 = arith.cmpi ne, %1, %c0_i32_0 : i32
    scf.if %2 {
      %cst_13 = arith.constant 0.000000e+00 : f32
      %15 = vector.broadcast %cst_13 : f32 to vector<16x128xf32>
      %c0_14 = arith.constant 0 : index
      %c0_15 = arith.constant 0 : index
      %16 = vector.load %arg10[%c0_14, %c0_15] : memref<16x128xf32, #tpu.memory_space<vmem>>, vector<16x128xf32>
      tpu.vector_store %arg10[%c0_14, %c0_15], %15 {strides = array<i32>} : memref<16x128xf32, #tpu.memory_space<vmem>>, vector<16x128xf32>,
    } else {
    }
    %c0 = arith.constant 0 : index
    %c0_1 = arith.constant 0 : index
    %3 = vector.load %arg3[%c0, %c0_1] : memref<16x128xbf16, #tpu.memory_space<vmem>>, vector<16x128xbf16>
    %c0_2 = arith.constant 0 : index
    %c0_3 = arith.constant 0 : index
    %4 = vector.load %arg5[%c0_2, %c0_3] : memref<128x128xbf16, #tpu.memory_space<vmem>>, vector<128x128xbf16>
    %cst = arith.constant dense<0.000000e+00> : vector<16x128xf32>
    %5 = tpu.matmul %3, %4, %cst {dimension_numbers = #tpu.dot_dimension_numbers<[1], [0], [0], [1], [0, 0, 1, 1], [], []>} : vector<16x128xbf16>, vector<128x128xbf16>, vector<16x128xf32> -> vector<16x128xf32>
    %c0_4 = arith.constant 0 : index
    %c0_5 = arith.constant 0 : index
    %6 = vector.load %arg10[%c0_4, %c0_5] : memref<16x128xf32, #tpu.memory_space<vmem>>, vector<16x128xf32>
    %c0_6 = arith.constant 0 : index
    %c0_7 = arith.constant 0 : index
    %7 = vector.load %arg2[%c0_6, %c0_7] : memref<16x16xbf16, #tpu.memory_space<vmem>>, vector<16x16xbf16>
    %8 = arith.truncf %5 : vector<16x128xf32> to vector<16x128xbf16>
    %cst_8 = arith.constant dense<0.000000e+00> : vector<16x128xf32>
    %9 = tpu.matmul %7, %8, %cst_8 {dimension_numbers = #tpu.dot_dimension_numbers<[1], [0], [0], [1], [0, 0, 1, 1], [], []>} : vector<16x16xbf16>, vector<16x128xbf16>, vector<16x128xf32> -> vector<16x128xf32>
    %10 = arith.addf %6, %9 : vector<16x128xf32>
    %c0_9 = arith.constant 0 : index
    %c0_10 = arith.constant 0 : index
    %11 = vector.load %arg10[%c0_9, %c0_10] : memref<16x128xf32, #tpu.memory_space<vmem>>, vector<16x128xf32>
    tpu.vector_store %arg10[%c0_9, %c0_10], %10 {strides = array<i32>} : memref<16x128xf32, #tpu.memory_space<vmem>>, vector<16x128xf32>,
    %c0_i32_11 = arith.constant 0 : i32
    %12 = arith.cmpi eq, %arg1, %c0_i32_11 : i32
    %13 = arith.extui %12 : i1 to i32
    %c0_i32_12 = arith.constant 0 : i32
    %14 = arith.cmpi ne, %13, %c0_i32_12 : i32
    scf.if %14 {
      %c0_13 = arith.constant 0 : index
      %c0_14 = arith.constant 0 : index
      %15 = vector.load %arg10[%c0_13, %c0_14] : memref<16x128xf32, #tpu.memory_space<vmem>>, vector<16x128xf32>
      %c0_15 = arith.constant 0 : index
      %c0_16 = arith.constant 0 : index
      %16 = vector.load %arg6[%c0_15, %c0_16] : memref<1x128xf32, #tpu.memory_space<vmem>>, vector<1x128xf32>
      %17 = vector.broadcast %16 : vector<1x128xf32> to vector<16x128xf32>
      %18 = arith.addf %15, %17 : vector<16x128xf32>
      %cst_17 = arith.constant 0.000000e+00 : f32
      %19 = vector.broadcast %cst_17 : f32 to vector<16x128xf32>
      %20 = arith.cmpf ogt, %18, %19 : vector<16x128xf32>
      %cst_18 = arith.constant 0.00999999977 : f32
      %21 = vector.broadcast %cst_18 : f32 to vector<16x128xf32>
      %22 = arith.mulf %21, %18 : vector<16x128xf32>
      %23 = arith.select %20, %18, %22 : vector<16x128xi1>, vector<16x128xf32>
      %c0_19 = arith.constant 0 : index
      %c0_20 = arith.constant 0 : index
      %24 = vector.load %arg4[%c0_19, %c0_20] : memref<16x128xf32, #tpu.memory_space<vmem>>, vector<16x128xf32>
      %25 = arith.addf %23, %24 : vector<16x128xf32>
      %c0_21 = arith.constant 0 : index
      %c0_22 = arith.constant 0 : index
      %26 = vector.load %arg7[%c0_21, %c0_22] : memref<1x128xf32, #tpu.memory_space<vmem>>, vector<1x128xf32>
      %c0_23 = arith.constant 0 : index
      %c0_24 = arith.constant 0 : index
      %27 = vector.load %arg8[%c0_23, %c0_24] : memref<1x128xf32, #tpu.memory_space<vmem>>, vector<1x128xf32>
      %28 = tpu.iota {dimensions = array<i32: 1>} : vector<16x128xi32>
      %c32_i32 = arith.constant 32 : i32
      %29 = vector.broadcast %c32_i32 : i32 to vector<16x128xi32>
      %30 = arith.cmpi slt, %28, %29 : vector<16x128xi32>
      %31 = arith.extui %30 : vector<16x128xi1> to vector<16x128xi32>
      %32 = arith.sitofp %31 : vector<16x128xi32> to vector<16x128xf32>
      %33 = arith.mulf %25, %32 : vector<16x128xf32>
      %cst_25 = arith.constant dense<0.000000e+00> : vector<16xf32>
      %34 = vector.multi_reduction <add>, %33, %cst_25 [1] : vector<16x128xf32> to vector<16xf32>
      %35 = vector.shape_cast %34 : vector<16xf32> to vector<16x1xf32>
      %cst_26 = arith.constant 3.125000e-02 : f32
      %36 = vector.broadcast %cst_26 : f32 to vector<16x1xf32>
      %37 = arith.mulf %35, %36 : vector<16x1xf32>
      %38 = vector.broadcast %37 : vector<16x1xf32> to vector<16x128xf32>
      %39 = arith.subf %33, %38 : vector<16x128xf32>
      %40 = arith.mulf %39, %32 : vector<16x128xf32>
      %41 = arith.mulf %40, %40 : vector<16x128xf32>
      %cst_27 = arith.constant dense<0.000000e+00> : vector<16xf32>
      %42 = vector.multi_reduction <add>, %41, %cst_27 [1] : vector<16x128xf32> to vector<16xf32>
      %43 = vector.shape_cast %42 : vector<16xf32> to vector<16x1xf32>
      %cst_28 = arith.constant 3.125000e-02 : f32
      %44 = vector.broadcast %cst_28 : f32 to vector<16x1xf32>
      %45 = arith.mulf %43, %44 : vector<16x1xf32>
      %cst_29 = arith.constant 9.99999974E-6 : f32
      %46 = vector.broadcast %cst_29 : f32 to vector<16x1xf32>
      %47 = arith.addf %45, %46 : vector<16x1xf32>
      %48 = math.rsqrt %47 : vector<16x1xf32>
      %49 = vector.broadcast %48 : vector<16x1xf32> to vector<16x128xf32>
      %50 = arith.mulf %40, %49 : vector<16x128xf32>
      %51 = vector.broadcast %26 : vector<1x128xf32> to vector<16x128xf32>
      %52 = arith.mulf %50, %51 : vector<16x128xf32>
      %53 = vector.broadcast %27 : vector<1x128xf32> to vector<16x128xf32>
      %54 = arith.addf %52, %53 : vector<16x128xf32>
      %55 = arith.truncf %54 : vector<16x128xf32> to vector<16x128xbf16>
      %c0_30 = arith.constant 0 : index
      %c0_31 = arith.constant 0 : index
      %56 = vector.load %arg9[%c0_30, %c0_31] : memref<16x128xbf16, #tpu.memory_space<vmem>>, vector<16x128xbf16>
      tpu.vector_store %arg9[%c0_30, %c0_31], %55 {strides = array<i32>} : memref<16x128xbf16, #tpu.memory_space<vmem>>, vector<16x128xbf16>,
    } else {
    }
    return
  }
  func.func @transform_0(%arg0: i32, %arg1: i32) -> (i32, i32) {
    %c0_i32 = arith.constant 0 : i32
    return %arg0, %arg1 : i32, i32
  }
  func.func @transform_1(%arg0: i32, %arg1: i32) -> (i32, i32) {
    %c0_i32 = arith.constant 0 : i32
    %c0_i32_0 = arith.constant 0 : i32
    return %arg1, %c0_i32 : i32, i32
  }
  func.func @transform_2(%arg0: i32, %arg1: i32) -> (i32, i32) {
    %c0_i32 = arith.constant 0 : i32
    %c0_i32_0 = arith.constant 0 : i32
    return %arg0, %c0_i32 : i32, i32
  }
  func.func @transform_3(%arg0: i32, %arg1: i32) -> (i32, i32) {
    %c0_i32 = arith.constant 0 : i32
    %c0_i32_0 = arith.constant 0 : i32
    %c0_i32_1 = arith.constant 0 : i32
    return %c0_i32, %c0_i32_0 : i32, i32
  }
  func.func @transform_4(%arg0: i32, %arg1: i32) -> (i32, i32) {
    %c0_i32 = arith.constant 0 : i32
    %c0_i32_0 = arith.constant 0 : i32
    %c0_i32_1 = arith.constant 0 : i32
    return %c0_i32, %c0_i32_0 : i32, i32
  }
  func.func @transform_5(%arg0: i32, %arg1: i32) -> (i32, i32) {
    %c0_i32 = arith.constant 0 : i32
    %c0_i32_0 = arith.constant 0 : i32
    %c0_i32_1 = arith.constant 0 : i32
    return %c0_i32, %c0_i32_0 : i32, i32
  }
  func.func @transform_6(%arg0: i32, %arg1: i32) -> (i32, i32) {
    %c0_i32 = arith.constant 0 : i32
    %c0_i32_0 = arith.constant 0 : i32
    %c0_i32_1 = arith.constant 0 : i32
    return %c0_i32, %c0_i32_0 : i32, i32
  }
  func.func @transform_7(%arg0: i32, %arg1: i32) -> (i32, i32) {
    %c0_i32 = arith.constant 0 : i32
    %c0_i32_0 = arith.constant 0 : i32
    return %arg0, %c0_i32 : i32, i32
  }
}

</mosaic_0001>

<llo_original>
// kernel: tpu_custom_call.1
$region0: #{tpu_custom_call.1}
  #allocation0 [shape = 'u32[]', space=smem, size = 0x4, offset = 0x4, fixed_abs, tag = 'smem constant byte address 0x4 - core index']
  #allocation1 [shape = 'u32[144,128]{1,0:T(1,128)}', space=vmem, size = 0x12000, scoped, tag = 'internal scratch']
  #allocation2 [shape = 'f32[16,128]{1,0:T(8,128)}', space=vmem, size = 0x2000, scoped, tag = 'scratch operand']
  %s0 = inlined_call_operand.hbm [shape: bf16[16,16], index: 0, kind: input, shape index: {}]
  %s1 = inlined_call_operand.hbm [shape: bf16[16,128], index: 1, kind: input, shape index: {}]
  %s2 = inlined_call_operand.hbm [shape: f32[16,128], index: 2, kind: input, shape index: {}]
  %s3 = inlined_call_operand.hbm [shape: bf16[128,128], index: 3, kind: input, shape index: {}]
  %s4 = inlined_call_operand.vmem [shape: f32[1,128], index: 4, kind: input, shape index: {}]
  %s5 = inlined_call_operand.vmem [shape: f32[1,128], index: 5, kind: input, shape index: {}]
  %s6 = inlined_call_operand.vmem [shape: f32[1,128], index: 6, kind: input, shape index: {}]
  %s7 = inlined_call_operand.hbm [shape: bf16[16,128], index: 7, kind: output, shape index: {}]
  %s8 = sld [smem:[#allocation0]]
  $region62: #{tpu_custom_call.1} parent=0
    _
  %s10 = ssub.s32 1, %s8
  %s11 = scalar_select 0, %s10, %s8
  $region1: #{tpu_custom_call.1} parent=0
    #allocation3 [shape = 'u8[4096]{0}', space=vmem, size = 0x1000, scoped, tag = 'input window, operand 0, single buffered']
    #allocation4 [shape = 's32[1]{0}', space=sflag, size = 0x4, scoped, tag = 'scoped memory for tpu_custom_call.1']
    #allocation5 [shape = 's32[1]{0}', space=sflag, size = 0x4, scoped, tag = 'scoped memory for tpu_custom_call.1']
    #allocation6 [shape = 'u8[4096]{0}', space=vmem, size = 0x1000, scoped, tag = 'input window, operand 1, single buffered']
    #allocation7 [shape = 's32[1]{0}', space=sflag, size = 0x4, scoped, tag = 'scoped memory for tpu_custom_call.1']
    #allocation8 [shape = 'u8[8192]{0}', space=vmem, size = 0x2000, scoped, tag = 'input window, operand 2, single buffered']
    #allocation9 [shape = 'u8[32768]{0}', space=vmem, size = 0x8000, scoped, tag = 'input window, operand 3, single buffered']
    #allocation10 [shape = 's32[1]{0}', space=sflag, size = 0x4, scoped, tag = 'scoped memory for tpu_custom_call.1']
    #allocation11 [shape = 'u8[4096]{0}', space=vmem, size = 0x1000, scoped, tag = 'output window, operand 0, single buffered']
    %12 = vsyncpa [#allocation4], 0
    %13 = vsyncpa [#allocation7], 0
    %14 = vsyncpa [#allocation10], 0
    %15 = vsyncpa [#allocation5], 0
    // Predicated region
    $region2: #{tpu_custom_call.1} parent=1 // pred_check
      _
    $region3: #{tpu_custom_call.1} parent=1 // pred_check_branch
      %17 = sbr.rel (0) target = $region5
    $region4: #{tpu_custom_call.1} parent=1 // pred_region
      %s19 = ssub.s32 128, 128
      %20 = vsyncadd [#allocation4], %s19
      %s21 = sshll.u32 [#allocation3], 4
      %s22 = int_to_ptr.vmem [resolvable:$true] %s21
      %27 = dma.hbm_to_vmem [thread:$0]  %s0, 128, %s22, [#allocation4], 64, 64, 4
    $region5: #{tpu_custom_call.1} parent=1 // pred_fallthru
      _
    // Predicated region
    $region6: #{tpu_custom_call.1} parent=1 // pred_check
      _
    $region7: #{tpu_custom_call.1} parent=1 // pred_check_branch
      %29 = sbr.rel (0) target = $region9
    $region8: #{tpu_custom_call.1} parent=1 // pred_region
      %s31 = ssub.s32 128, 128
      %32 = vsyncadd [#allocation7], %s31
      %s33 = sshll.u32 [#allocation6], 4
      %s34 = int_to_ptr.vmem [resolvable:$true] %s33
      %39 = dma.hbm_to_vmem [thread:$0]  %s1, 128, %s34, [#allocation7], 64, 64, 4
    $region9: #{tpu_custom_call.1} parent=1 // pred_fallthru
      _
    // Predicated region
    $region10: #{tpu_custom_call.1} parent=1 // pred_check
      _
    $region11: #{tpu_custom_call.1} parent=1 // pred_check_branch
      %41 = sbr.rel (0) target = $region13
    $region12: #{tpu_custom_call.1} parent=1 // pred_region
      %s43 = ssub.s32 256, 256
      %44 = vsyncadd [#allocation7], %s43
      %s45 = sshll.u32 [#allocation8], 4
      %s46 = int_to_ptr.vmem [resolvable:$true] %s45
      %51 = dma.hbm_to_vmem [thread:$0]  %s2, 256, %s46, [#allocation7], 128, 128, 8
    $region13: #{tpu_custom_call.1} parent=1 // pred_fallthru
      _
    // Predicated region
    $region14: #{tpu_custom_call.1} parent=1 // pred_check
      _
    $region15: #{tpu_custom_call.1} parent=1 // pred_check_branch
      %53 = sbr.rel (0) target = $region17
    $region16: #{tpu_custom_call.1} parent=1 // pred_region
      %s55 = ssub.s32 1024, 1024
      %56 = vsyncadd [#allocation10], %s55
      %s57 = sshll.u32 [#allocation9], 4
      %s58 = int_to_ptr.vmem [resolvable:$true] %s57
      %63 = dma.hbm_to_vmem [thread:$0]  %s3, 1024, %s58, [#allocation10], 64, 64, 4
    $region17: #{tpu_custom_call.1} parent=1 // pred_fallthru
      _
    // Predicated region
    $region18: #{tpu_custom_call.1} parent=1 // pred_check
      _
    $region19: #{tpu_custom_call.1} parent=1 // pred_check_branch
      %65 = sbr.rel (0) target = $region21
    $region20: #{tpu_custom_call.1} parent=1 // pred_region
      _
    $region21: #{tpu_custom_call.1} parent=1 // pred_fallthru
      _
    // Predicated region
    $region22: #{tpu_custom_call.1} parent=1 // pred_check
      _
    $region23: #{tpu_custom_call.1} parent=1 // pred_check_branch
      %67 = sbr.rel (0) target = $region25
    $region24: #{tpu_custom_call.1} parent=1 // pred_region
      _
    $region25: #{tpu_custom_call.1} parent=1 // pred_fallthru
      _
    // Predicated region
    $region26: #{tpu_custom_call.1} parent=1 // pred_check
      _
    $region27: #{tpu_custom_call.1} parent=1 // pred_check_branch
      %69 = sbr.rel (0) target = $region29
    $region28: #{tpu_custom_call.1} parent=1 // pred_region
      _
    $region29: #{tpu_custom_call.1} parent=1 // pred_fallthru
      _
    // Predicated region
    $region30: #{tpu_custom_call.1} parent=1 // pred_check
      _
    $region31: #{tpu_custom_call.1} parent=1 // pred_check_branch
      %71 = sbr.rel (0) target = $region33
    $region32: #{tpu_custom_call.1} parent=1 // pred_region
      %72 = dma.done [#allocation4], 128
    $region33: #{tpu_custom_call.1} parent=1 // pred_fallthru
      _
    // Predicated region
    $region34: #{tpu_custom_call.1} parent=1 // pred_check
      _
    $region35: #{tpu_custom_call.1} parent=1 // pred_check_branch
      %74 = sbr.rel (0) target = $region37
    $region36: #{tpu_custom_call.1} parent=1 // pred_region
      %75 = dma.done [#allocation7], 128
    $region37: #{tpu_custom_call.1} parent=1 // pred_fallthru
      _
    // Predicated region
    $region38: #{tpu_custom_call.1} parent=1 // pred_check
      _
    $region39: #{tpu_custom_call.1} parent=1 // pred_check_branch
      %77 = sbr.rel (0) target = $region41
    $region40: #{tpu_custom_call.1} parent=1 // pred_region
      %78 = dma.done [#allocation7], 256
    $region41: #{tpu_custom_call.1} parent=1 // pred_fallthru
      _
    // Predicated region
    $region42: #{tpu_custom_call.1} parent=1 // pred_check
      _
    $region43: #{tpu_custom_call.1} parent=1 // pred_check_branch
      %80 = sbr.rel (0) target = $region45
    $region44: #{tpu_custom_call.1} parent=1 // pred_region
      %81 = dma.done [#allocation10], 1024
    $region45: #{tpu_custom_call.1} parent=1 // pred_fallthru
      _
    %p83 = scmp.eq.s32.totalorder 0, 0
    // Predicated region
    $region46: #{tpu_custom_call.1} parent=1 // pred_check
      %p84 = pneg %p83
    $region47: #{tpu_custom_call.1} parent=1 // pred_check_branch
      %86 = sbr.rel (%p84) target = $region49
    $region48: #{tpu_custom_call.1} parent=1 // pred_region
      %87 = vst [vmem:[#allocation2] sm:$0xff] 0.0
      %88 = vst [vmem:[#allocation2 + $0x8] sm:$0xff] 0.0
    $region49: #{tpu_custom_call.1} parent=1 // pred_fallthru
      _
    %v89 = vld [vmem:[#allocation6] sm:$0xf]
    %v90 = vld [vmem:[#allocation6 + $0x4] sm:$0xf]
    %v91 = vld [vmem:[#allocation9] sm:$0xf]
    %v92 = vld [vmem:[#allocation9 + $0x4] sm:$0xf]
    %v93 = vld [vmem:[#allocation9 + $0x8] sm:$0xf]
    %v94 = vld [vmem:[#allocation9 + $0xc] sm:$0xf]
    %v95 = vld [vmem:[#allocation9 + $0x10] sm:$0xf]
    %v96 = vld [vmem:[#allocation9 + $0x14] sm:$0xf]
    %v97 = vld [vmem:[#allocation9 + $0x18] sm:$0xf]
    %v98 = vld [vmem:[#allocation9 + $0x1c] sm:$0xf]
    %v99 = vld [vmem:[#allocation9 + $0x20] sm:$0xf]
    %v100 = vld [vmem:[#allocation9 + $0x24] sm:$0xf]
    %v101 = vld [vmem:[#allocation9 + $0x28] sm:$0xf]
    %v102 = vld [vmem:[#allocation9 + $0x2c] sm:$0xf]
    %v103 = vld [vmem:[#allocation9 + $0x30] sm:$0xf]
    %v104 = vld [vmem:[#allocation9 + $0x34] sm:$0xf]
    %v105 = vld [vmem:[#allocation9 + $0x38] sm:$0xf]
    %v106 = vld [vmem:[#allocation9 + $0x3c] sm:$0xf]
    %v109 = vunpack.c.l.b16 %v89
    %v110 = vunpack.c.l.b16 %v90
    %v111 = vpack.c.b16 %v110, %v109
    %v129 = vunpack.c.l.b16 %v91
    %v130 = vunpack.c.l.b16 %v92
    %v131 = vunpack.c.l.b16 %v93
    %v132 = vunpack.c.l.b16 %v94
    %v133 = vunpack.c.l.b16 %v95
    %v134 = vunpack.c.l.b16 %v96
    %v135 = vunpack.c.l.b16 %v97
    %v136 = vunpack.c.l.b16 %v98
    %v137 = vunpack.c.l.b16 %v99
    %v138 = vunpack.c.l.b16 %v100
    %v139 = vunpack.c.l.b16 %v101
    %v140 = vunpack.c.l.b16 %v102
    %v141 = vunpack.c.l.b16 %v103
    %v142 = vunpack.c.l.b16 %v104
    %v143 = vunpack.c.l.b16 %v105
    %v144 = vunpack.c.l.b16 %v106
    %v145 = vpack.c.b16 %v130, %v129
    %v146 = vpack.c.b16 %v132, %v131
    %v147 = vpack.c.b16 %v134, %v133
    %v148 = vpack.c.b16 %v136, %v135
    %v149 = vpack.c.b16 %v138, %v137
    %v150 = vpack.c.b16 %v140, %v139
    %v151 = vpack.c.b16 %v142, %v141
    %v152 = vpack.c.b16 %v144, %v143
    %161 = vmatprep.subr.bf16.mxu0 0
    %162 = vmatpush1.bf16.msra.mxu0 %v152
    %163 = vmatprep.subr.bf16.mxu0 0
    %164 = vmatpush1.bf16.msra.mxu0 %v151
    %165 = vmatprep.subr.bf16.mxu0 0
    %166 = vmatpush1.bf16.msra.mxu0 %v150
    %167 = vmatprep.subr.bf16.mxu0 0
    %168 = vmatpush1.bf16.msra.mxu0 %v149
    %169 = vmatprep.subr.bf16.mxu0 0
    %170 = vmatpush1.bf16.msra.mxu0 %v148
    %171 = vmatprep.subr.bf16.mxu0 0
    %172 = vmatpush1.bf16.msra.mxu0 %v147
    %173 = vmatprep.subr.bf16.mxu0 0
    %174 = vmatpush1.bf16.msra.mxu0 %v146
    %175 = vmatprep.subr.bf16.mxu0 0
    %176 = vmatpush1.bf16.msra.mxu0 %v145
    %177 = vmatprep.subr.bf16.mxu0 0
    %178 = vmatpush2.bf16.msra.mxu0 0
    %179 = vmatprep.subr.bf16.mxu0 0
    %180 = vmatpush2.bf16.msra.mxu0 0
    %181 = vmatprep.subr.bf16.mxu0 0
    %182 = vmatpush2.bf16.msra.mxu0 0
    %183 = vmatprep.subr.bf16.mxu0 0
    %184 = vmatpush2.bf16.msra.mxu0 0
    %185 = vmatprep.subr.bf16.mxu0 0
    %186 = vmatpush2.bf16.msra.mxu0 0
    %187 = vmatprep.subr.bf16.mxu0 0
    %188 = vmatpush2.bf16.msra.mxu0 0
    %189 = vmatprep.subr.bf16.mxu0 0
    %190 = vmatpush2.bf16.msra.mxu0 0
    %191 = vmatprep.subr.bf16.mxu0 0
    %192 = vmatpush2.bf16.msra.mxu0 0
    %193 = vmatprep.mubr.bf16.mxu0 0
    %194 = vmatmul.mubr.bf16.gmra.mxu0 %v111
    %v195 = vpop.f32.mrf.mxu0
    %v196 = vadd.f32 0.0, %v195
    %v197 = vpop.f32.mrf.mxu0
    %v198 = vpop.f32.mrf.mxu0
    %v199 = vadd.f32 0.0, %v198
    %v200 = vpop.f32.mrf.mxu0
    %201 = vdwg.mxu0
    %v202 = vld [vmem:[#allocation2] sm:$0xff]
    %v203 = vld [vmem:[#allocation2 + $0x8] sm:$0xff]
    %v204 = vld [vmem:[#allocation3] sm:$0xf]
    %v205 = vld [vmem:[#allocation3 + $0x4] sm:$0xf]
    %v206 = vpack.c.bf16 %v199, %v196
    %v209 = vunpack.c.l.b16 %v204
    %v210 = vunpack.c.l.b16 %v205
    %v211 = vpack.c.b16 %v210, %v209
    %vm212 = vcmask 130048
    %v214 = vsel %vm212, %v211, 0
    %216 = vmatprep.subr.bf16.mxu0 0
    %217 = vmatpush1.bf16.msra.mxu0 0
    %218 = vmatprep.subr.bf16.mxu0 0
    %219 = vmatpush1.bf16.msra.mxu0 0
    %220 = vmatprep.subr.bf16.mxu0 0
    %221 = vmatpush1.bf16.msra.mxu0 0
    %222 = vmatprep.subr.bf16.mxu0 0
    %223 = vmatpush1.bf16.msra.mxu0 0
    %224 = vmatprep.subr.bf16.mxu0 0
    %225 = vmatpush1.bf16.msra.mxu0 0
    %226 = vmatprep.subr.bf16.mxu0 0
    %227 = vmatpush1.bf16.msra.mxu0 0
    %228 = vmatprep.subr.bf16.mxu0 0
    %229 = vmatpush1.bf16.msra.mxu0 0
    %230 = vmatprep.subr.bf16.mxu0 0
    %231 = vmatpush1.bf16.msra.mxu0 %v206
    %232 = vmatprep.subr.bf16.mxu0 0
    %233 = vmatpush2.bf16.msra.mxu0 0
    %234 = vmatprep.subr.bf16.mxu0 0
    %235 = vmatpush2.bf16.msra.mxu0 0
    %236 = vmatprep.subr.bf16.mxu0 0
    %237 = vmatpush2.bf16.msra.mxu0 0
    %238 = vmatprep.subr.bf16.mxu0 0
    %239 = vmatpush2.bf16.msra.mxu0 0
    %240 = vmatprep.subr.bf16.mxu0 0
    %241 = vmatpush2.bf16.msra.mxu0 0
    %242 = vmatprep.subr.bf16.mxu0 0
    %243 = vmatpush2.bf16.msra.mxu0 0
    %244 = vmatprep.subr.bf16.mxu0 0
    %245 = vmatpush2.bf16.msra.mxu0 0
    %246 = vmatprep.subr.bf16.mxu0 0
    %247 = vmatpush2.bf16.msra.mxu0 0
    %248 = vmatprep.mubr.bf16.mxu0 0
    %249 = vmatmul.mubr.bf16.gmra.mxu0 %v214
    %v250 = vpop.f32.mrf.mxu0
    %v251 = vadd.f32 0.0, %v250
    %v252 = vpop.f32.mrf.mxu0
    %v253 = vpop.f32.mrf.mxu0
    %v254 = vadd.f32 0.0, %v253
    %v255 = vpop.f32.mrf.mxu0
    %256 = vdwg.mxu0
    %v257 = vadd.f32 %v202, %v251
    %v258 = vadd.f32 %v203, %v254
    %259 = vst [vmem:[#allocation2] sm:$0xff] %v257
    %260 = vst [vmem:[#allocation2 + $0x8] sm:$0xff] %v258
    // Predicated region
    $region50: #{tpu_custom_call.1} parent=1 // pred_check
      %p261 = pneg %p83
    $region51: #{tpu_custom_call.1} parent=1 // pred_check_branch
      %263 = sbr.rel (%p261) target = $region53
    $region52: #{tpu_custom_call.1} parent=1 // pred_region
      %v264 = vld [vmem:[#allocation2] sm:$0xff]
      %v265 = vld [vmem:[#allocation2 + $0x8] sm:$0xff]
      %v266 = vld [vmem:[%s4] sm:$0x1]
      %v268 = vlaneseq
      %v269 = vshrl.u32 %v268, 7
      %v270 = vsub.s32 0, %v269
      %v271 = vrot.slane %v266, %v270
      %v273 = vadd.f32 %v264, %v271
      %v274 = vadd.f32 %v265, %v271
      %vm275 = vcmp.gt.f32.partialorder %v273, 0.0
      %vm276 = vcmp.gt.f32.partialorder %v274, 0.0
      %v277 = vmul.f32 %v273, 0.01
      %v278 = vmul.f32 %v274, 0.01
      %v279 = vsel %vm275, %v273, %v277
      %v280 = vsel %vm276, %v274, %v278
      %v281 = vld [vmem:[#allocation8] sm:$0xff]
      %v282 = vld [vmem:[#allocation8 + $0x8] sm:$0xff]
      %v283 = vadd.f32 %v279, %v281
      %v284 = vadd.f32 %v280, %v282
      %v285 = vld [vmem:[%s5] sm:$0x1]
      %v286 = vld [vmem:[%s6] sm:$0x1]
      %v287 = vlaneseq
      %v288 = vand.u32 %v287, 127
      %vm289 = vcmp.lt.s32.totalorder %v288, 32
      %v290 = vsel %vm289, 1, 0
      %v291 = vcvt.s32.f32 %v290
      %v292 = vmul.f32 %v283, %v291
      %v293 = vmul.f32 %v284, %v291
      %294 = vadd.xlane.f32.xlu0 %v292
      %v295 = vpop.xlane.xlu0 %294
      %296 = vadd.xlane.f32.xlu0 %v293
      %v297 = vpop.xlane.xlu0 %296
      %v298 = vmul.f32 %v295, 0.03125
      %v299 = vmul.f32 %v297, 0.03125
      %v300 = vsub.f32 %v292, %v298
      %v301 = vsub.f32 %v293, %v299
      %v302 = vmul.f32 %v300, %v291
      %v303 = vmul.f32 %v301, %v291
      %v304 = vmul.f32 %v302, %v302
      %v305 = vmul.f32 %v303, %v303
      %306 = vadd.xlane.f32.xlu0 %v304
      %v307 = vpop.xlane.xlu0 %306
      %308 = vadd.xlane.f32.xlu0 %v305
      %v309 = vpop.xlane.xlu0 %308
      %v310 = vmul.f32 %v307, 0.03125
      %v311 = vmul.f32 %v309, 0.03125
      %v312 = vadd.f32 %v310, 1e-05
      %v313 = vadd.f32 %v311, 1e-05
      %v314 = vrsqrt.pop %v312
      %v315 = vrsqrt.pop %v313
      %v316 = vmul.f32 %v302, %v314
      %v317 = vmul.f32 %v303, %v315
      %v319 = vlaneseq
      %v320 = vshrl.u32 %v319, 7
      %v321 = vsub.s32 0, %v320
      %v322 = vrot.slane %v285, %v321
      %v324 = vmul.f32 %v316, %v322
      %v325 = vmul.f32 %v317, %v322
      %v327 = vlaneseq
      %v328 = vshrl.u32 %v327, 7
      %v329 = vsub.s32 0, %v328
      %v330 = vrot.slane %v286, %v329
      %v332 = vadd.f32 %v324, %v330
      %v333 = vadd.f32 %v325, %v330
      %v334 = vpack.c.bf16 %v333, %v332
      %v336 = vunpack.c.l.b16 %v334
      %v337 = vunpack.c.h.b16 %v334
      %v338 = vpack.c.b16 %v336, %v336
      %v339 = vpack.c.b16 %v337, %v337
      %342 = vst [vmem:[#allocation11] sm:$0xf] %v338
      %343 = vst [vmem:[#allocation11 + $0x4] sm:$0xf] %v339
    $region53: #{tpu_custom_call.1} parent=1 // pred_fallthru
      _
    // Predicated region
    $region54: #{tpu_custom_call.1} parent=1 // pred_check
      _
    $region55: #{tpu_custom_call.1} parent=1 // pred_check_branch
      %345 = sbr.rel (0) target = $region57
    $region56: #{tpu_custom_call.1} parent=1 // pred_region
      %s347 = ssub.s32 128, 128
      %348 = vsyncadd [#allocation5], %s347
      %s349 = sshll.u32 [#allocation11], 4
      %s350 = int_to_ptr.vmem [resolvable:$true] %s349
      %355 = dma.vmem_to_hbm [thread:$0]  %s350, 128, %s7, [#allocation5], 64, 64, 4
    $region57: #{tpu_custom_call.1} parent=1 // pred_fallthru
      _
    // Predicated region
    $region58: #{tpu_custom_call.1} parent=1 // pred_check
      _
    $region59: #{tpu_custom_call.1} parent=1 // pred_check_branch
      %357 = sbr.rel (0) target = $region61
    $region60: #{tpu_custom_call.1} parent=1 // pred_region
      %358 = dma.done [#allocation5], 128
    $region61: #{tpu_custom_call.1} parent=1 // pred_fallthru
      _
    %359 = vsyncpa [#allocation4], 1
    %360 = vsyncpa [#allocation7], 1
    %361 = vsyncpa [#allocation10], 1
    %362 = vsyncpa [#allocation5], 1

</llo_original>
